<compile_context>
chip_gen: v7x
topology: tpu7x:2x2x1
jax: 0.10.0
libtpu: 0.0.40
codegen_flags: <defaults>
</compile_context>

<pallas_src>
import jax
import jax.numpy as jnp
from jax.experimental import pallas as pl
from jax.experimental.pallas import tpu as pltpu


def _classifier_kernel(x_ref, w1_ref, b1_ref, w2_ref, b2_ref, w3_ref, b3_ref, o_ref):
    # fc1 + ReLU  (MXU matmul, f32 accumulate)
    h = jnp.dot(x_ref[...], w1_ref[...], preferred_element_type=jnp.float32)
    h = jnp.maximum(h + b1_ref[...], 0.0)
    # fc2 + ReLU
    h = jnp.dot(h, w2_ref[...], preferred_element_type=jnp.float32)
    h = jnp.maximum(h + b2_ref[...], 0.0)
    # output layer (hidden -> 1): VPU multiply + cross-lane reduce, avoids a degenerate
    # single-column MXU matmul.  w3_ref is (1, hidden), b3_ref is (1, 1).
    logits = jnp.sum(h * w3_ref[...], axis=-1, keepdims=True) + b3_ref[...]
    o_ref[...] = jax.nn.sigmoid(logits).astype(o_ref.dtype)


def classifier_forward(x, w1, b1, w2, b2, w3, b3, *, tile_b=1024):
    """x: (B, input_dim) f32. Weights are (in_features, out_features), biases (1, out).
    Returns (B, 1) f32 sigmoid probabilities."""
    B, in_dim = x.shape
    hidden = w1.shape[1]

    def _round_up(a, m):
        return (a + m - 1) // m * m

    # Clamp the tile to the (sublane-aligned) batch so tiny batches stay single-tile.
    tile_b = min(tile_b, _round_up(B, 8))
    padded_b = _round_up(B, tile_b)
    num_tiles = padded_b // tile_b

    if padded_b != B:
        x = jnp.pad(x, ((0, padded_b - B), (0, 0)))

    # Present w3 as a (1, hidden) row so the kernel's output layer is a broadcasted VPU
    # multiply + reduce (cheap, done once outside the kernel).
    w3_row = jnp.reshape(w3, (1, hidden))
    b3_2d = jnp.reshape(b3, (1, 1))

    def resident(arr):
        # Constant block index -> Pallas keeps this block VMEM-resident across grid steps.
        return pl.BlockSpec(arr.shape, lambda i: (0,) * arr.ndim)

    out = pl.pallas_call(
        _classifier_kernel,
        out_shape=jax.ShapeDtypeStruct((padded_b, 1), jnp.float32),
        grid=(num_tiles,),
        in_specs=[
            pl.BlockSpec((tile_b, in_dim), lambda i: (i, 0)),  # x: streamed, double-buffered
            resident(w1), resident(b1),
            resident(w2), resident(b2),
            resident(w3_row), resident(b3_2d),
        ],
        out_specs=pl.BlockSpec((tile_b, 1), lambda i: (i, 0)),
        compiler_params=pltpu.CompilerParams(
            dimension_semantics=("parallel",),  # v7x: shard batch tiles across both TCs
        ),
    )(x, w1, b1, w2, b2, w3_row, b3_2d)

    return out[:B]


def init_params(key, input_dim, hidden_dim, output_dim=1):
    """Deterministic init mimicking nn.Linear default (uniform(-1/sqrt(fan_in), 1/sqrt(fan_in)))."""
    ks = jax.random.split(key, 6)

    def lin(kw, kb, fan_in, fan_out):
        bound = 1.0 / jnp.sqrt(jnp.float32(fan_in))
        w = jax.random.uniform(kw, (fan_in, fan_out), jnp.float32, -bound, bound)
        b = jax.random.uniform(kb, (1, fan_out), jnp.float32, -bound, bound)
        return w, b

    w1, b1 = lin(ks[0], ks[1], input_dim, hidden_dim)
    w2, b2 = lin(ks[2], ks[3], hidden_dim, hidden_dim)
    w3, b3 = lin(ks[4], ks[5], hidden_dim, output_dim)
    return w1, b1, w2, b2, w3, b3


if __name__ == "__main__":
    # args.n_hidden = 4, args.n_units[1] = 8 -> input_dim = 32 ; args.classfier_hidden_dim = 32
    input_dim, hidden_dim, batch = 32, 32, 8

    key = jax.random.PRNGKey(0)
    k_x, k_p, k_x2 = jax.random.split(key, 3)
    x = jax.random.normal(k_x, (batch, input_dim), jnp.float32)
    params = init_params(k_p, input_dim, hidden_dim)

    def reference(x, w1, b1, w2, b2, w3, b3):
        h = jnp.maximum(x @ w1 + b1, 0.0)
        h = jnp.maximum(h @ w2 + b2, 0.0)
        return jax.nn.sigmoid(h @ w3 + b3)

    # Small single-tile run.
    out = jax.block_until_ready(classifier_forward(x, *params))
    ref = reference(x, *params)
    assert out.shape == (batch, 1)
    assert jnp.allclose(out, ref, atol=2e-3, rtol=2e-3), float(jnp.max(jnp.abs(out - ref)))

    # Exercise the multi-tile / padded-batch grid path with a small tile.
    batch2 = 200
    x2 = jax.random.normal(k_x2, (batch2, input_dim), jnp.float32)
    out2 = jax.block_until_ready(classifier_forward(x2, *params, tile_b=64))
    ref2 = reference(x2, *params)
    assert out2.shape == (batch2, 1)
    assert jnp.allclose(out2, ref2, atol=2e-3, rtol=2e-3), float(jnp.max(jnp.abs(out2 - ref2)))

    print("KERNEL_OK")
</pallas_src>

<mosaic_0001>
module attributes {stable_mosaic.version = 11 : i64} {
  func.func @_classifier_kernel(%arg0: i32, %arg1: memref<8x32xf32, #tpu.memory_space<vmem>>, %arg2: memref<32x32xf32, #tpu.memory_space<vmem>>, %arg3: memref<1x32xf32, #tpu.memory_space<vmem>>, %arg4: memref<32x32xf32, #tpu.memory_space<vmem>>, %arg5: memref<1x32xf32, #tpu.memory_space<vmem>>, %arg6: memref<1x32xf32, #tpu.memory_space<vmem>>, %arg7: memref<1x1xf32, #tpu.memory_space<vmem>>, %arg8: memref<8x1xf32, #tpu.memory_space<vmem>>) attributes {dimension_semantics = [#tpu.dimension_semantics<parallel>], iteration_bounds = array<i64: 1>, scalar_prefetch = 0 : i64, scratch_operands = 0 : i64, tpu.core_type = #tpu.core_type<tc>, window_params = [{transform_indices = @transform_0, window_bounds = array<i64: 8, 32>}, {pipeline_mode = #tpu.pipeline_mode<synchronous>, transform_indices = @transform_1, window_bounds = array<i64: 32, 32>}, {pipeline_mode = #tpu.pipeline_mode<synchronous>, transform_indices = @transform_2, window_bounds = array<i64: 1, 32>}, {pipeline_mode = #tpu.pipeline_mode<synchronous>, transform_indices = @transform_3, window_bounds = array<i64: 32, 32>}, {pipeline_mode = #tpu.pipeline_mode<synchronous>, transform_indices = @transform_4, window_bounds = array<i64: 1, 32>}, {pipeline_mode = #tpu.pipeline_mode<synchronous>, transform_indices = @transform_5, window_bounds = array<i64: 1, 32>}, {pipeline_mode = #tpu.pipeline_mode<synchronous>, transform_indices = @transform_6, window_bounds = array<i64: 1, 1>}, {transform_indices = @transform_7, window_bounds = array<i64: 8, 1>}]} {
    %c0 = arith.constant 0 : index
    %c0_0 = arith.constant 0 : index
    %0 = vector.load %arg1[%c0, %c0_0] : memref<8x32xf32, #tpu.memory_space<vmem>>, vector<8x32xf32>
    %c0_1 = arith.constant 0 : index
    %c0_2 = arith.constant 0 : index
    %1 = vector.load %arg2[%c0_1, %c0_2] : memref<32x32xf32, #tpu.memory_space<vmem>>, vector<32x32xf32>
    %cst = arith.constant dense<0.000000e+00> : vector<8x32xf32>
    %2 = tpu.matmul %0, %1, %cst {dimension_numbers = #tpu.dot_dimension_numbers<[1], [0], [0], [1], [0, 0, 1, 1], [], []>} : vector<8x32xf32>, vector<32x32xf32>, vector<8x32xf32> -> vector<8x32xf32>
    %c0_3 = arith.constant 0 : index
    %c0_4 = arith.constant 0 : index
    %3 = vector.load %arg3[%c0_3, %c0_4] : memref<1x32xf32, #tpu.memory_space<vmem>>, vector<1x32xf32>
    %4 = vector.broadcast %3 : vector<1x32xf32> to vector<8x32xf32>
    %5 = arith.addf %2, %4 : vector<8x32xf32>
    %cst_5 = arith.constant 0.000000e+00 : f32
    %6 = vector.broadcast %cst_5 : f32 to vector<8x32xf32>
    %7 = arith.maximumf %5, %6 : vector<8x32xf32>
    %c0_6 = arith.constant 0 : index
    %c0_7 = arith.constant 0 : index
    %8 = vector.load %arg4[%c0_6, %c0_7] : memref<32x32xf32, #tpu.memory_space<vmem>>, vector<32x32xf32>
    %cst_8 = arith.constant dense<0.000000e+00> : vector<8x32xf32>
    %9 = tpu.matmul %7, %8, %cst_8 {dimension_numbers = #tpu.dot_dimension_numbers<[1], [0], [0], [1], [0, 0, 1, 1], [], []>} : vector<8x32xf32>, vector<32x32xf32>, vector<8x32xf32> -> vector<8x32xf32>
    %c0_9 = arith.constant 0 : index
    %c0_10 = arith.constant 0 : index
    %10 = vector.load %arg5[%c0_9, %c0_10] : memref<1x32xf32, #tpu.memory_space<vmem>>, vector<1x32xf32>
    %11 = vector.broadcast %10 : vector<1x32xf32> to vector<8x32xf32>
    %12 = arith.addf %9, %11 : vector<8x32xf32>
    %cst_11 = arith.constant 0.000000e+00 : f32
    %13 = vector.broadcast %cst_11 : f32 to vector<8x32xf32>
    %14 = arith.maximumf %12, %13 : vector<8x32xf32>
    %c0_12 = arith.constant 0 : index
    %c0_13 = arith.constant 0 : index
    %15 = vector.load %arg6[%c0_12, %c0_13] : memref<1x32xf32, #tpu.memory_space<vmem>>, vector<1x32xf32>
    %16 = vector.broadcast %15 : vector<1x32xf32> to vector<8x32xf32>
    %17 = arith.mulf %14, %16 : vector<8x32xf32>
    %cst_14 = arith.constant dense<0.000000e+00> : vector<8xf32>
    %18 = vector.multi_reduction <add>, %17, %cst_14 [1] : vector<8x32xf32> to vector<8xf32>
    %19 = vector.shape_cast %18 : vector<8xf32> to vector<8x1xf32>
    %c0_15 = arith.constant 0 : index
    %c0_16 = arith.constant 0 : index
    %20 = vector.load %arg7[%c0_15, %c0_16] : memref<1x1xf32, #tpu.memory_space<vmem>>, vector<1x1xf32>
    %21 = vector.broadcast %20 : vector<1x1xf32> to vector<8x1xf32>
    %22 = arith.addf %19, %21 : vector<8x1xf32>
    %23 = arith.negf %22 : vector<8x1xf32>
    %24 = math.exp %23 : vector<8x1xf32>
    %cst_17 = arith.constant 1.000000e+00 : f32
    %25 = vector.broadcast %cst_17 : f32 to vector<8x1xf32>
    %26 = arith.addf %25, %24 : vector<8x1xf32>
    %27 = arith.divf %25, %26 : vector<8x1xf32>
    %c0_18 = arith.constant 0 : index
    %c0_19 = arith.constant 0 : index
    %28 = vector.load %arg8[%c0_18, %c0_19] : memref<8x1xf32, #tpu.memory_space<vmem>>, vector<8x1xf32>
    tpu.vector_store %arg8[%c0_18, %c0_19], %27 {strides = array<i32>} : memref<8x1xf32, #tpu.memory_space<vmem>>, vector<8x1xf32>,
    return
  }
  func.func @transform_0(%arg0: i32) -> (i32, i32) {
    %c0_i32 = arith.constant 0 : i32
    %c0_i32_0 = arith.constant 0 : i32
    return %arg0, %c0_i32 : i32, i32
  }
  func.func @transform_1(%arg0: i32) -> (i32, i32) {
    %c0_i32 = arith.constant 0 : i32
    %c0_i32_0 = arith.constant 0 : i32
    %c0_i32_1 = arith.constant 0 : i32
    return %c0_i32, %c0_i32_0 : i32, i32
  }
  func.func @transform_2(%arg0: i32) -> (i32, i32) {
    %c0_i32 = arith.constant 0 : i32
    %c0_i32_0 = arith.constant 0 : i32
    %c0_i32_1 = arith.constant 0 : i32
    return %c0_i32, %c0_i32_0 : i32, i32
  }
  func.func @transform_3(%arg0: i32) -> (i32, i32) {
    %c0_i32 = arith.constant 0 : i32
    %c0_i32_0 = arith.constant 0 : i32
    %c0_i32_1 = arith.constant 0 : i32
    return %c0_i32, %c0_i32_0 : i32, i32
  }
  func.func @transform_4(%arg0: i32) -> (i32, i32) {
    %c0_i32 = arith.constant 0 : i32
    %c0_i32_0 = arith.constant 0 : i32
    %c0_i32_1 = arith.constant 0 : i32
    return %c0_i32, %c0_i32_0 : i32, i32
  }
  func.func @transform_5(%arg0: i32) -> (i32, i32) {
    %c0_i32 = arith.constant 0 : i32
    %c0_i32_0 = arith.constant 0 : i32
    %c0_i32_1 = arith.constant 0 : i32
    return %c0_i32, %c0_i32_0 : i32, i32
  }
  func.func @transform_6(%arg0: i32) -> (i32, i32) {
    %c0_i32 = arith.constant 0 : i32
    %c0_i32_0 = arith.constant 0 : i32
    %c0_i32_1 = arith.constant 0 : i32
    return %c0_i32, %c0_i32_0 : i32, i32
  }
  func.func @transform_7(%arg0: i32) -> (i32, i32) {
    %c0_i32 = arith.constant 0 : i32
    %c0_i32_0 = arith.constant 0 : i32
    return %arg0, %c0_i32 : i32, i32
  }
}

</mosaic_0001>

<llo_original>
// kernel: tpu_custom_call.1
$region0: #{tpu_custom_call.1}
  #allocation0 [shape = 'u32[]', space=smem, size = 0x4, offset = 0x4, fixed_abs, tag = 'smem constant byte address 0x4 - core index']
  #allocation1 [shape = 'u32[144,128]{1,0:T(1,128)}', space=vmem, size = 0x12000, scoped, tag = 'internal scratch']
  #allocation2 [shape = 'f32[1,1]{1,0:T(1,128)S(1)}', space=vmem, size = 0x200, scoped, tag = 'scoped memory for tpu_custom_call.1']
  %s0 = inlined_call_operand.hbm [shape: f32[8,32], index: 0, kind: input, shape index: {}]
  %s1 = inlined_call_operand.hbm [shape: f32[32,32], index: 1, kind: input, shape index: {}]
  %s2 = inlined_call_operand.vmem [shape: f32[1,32], index: 2, kind: input, shape index: {}]
  %s3 = inlined_call_operand.hbm [shape: f32[32,32], index: 3, kind: input, shape index: {}]
  %s4 = inlined_call_operand.vmem [shape: f32[1,32], index: 4, kind: input, shape index: {}]
  %s5 = inlined_call_operand.vmem [shape: f32[1,32], index: 5, kind: input, shape index: {}]
  %s6 = inlined_call_operand.<no memory space> [shape: f32[1,1], index: 6, kind: input, shape index: {}]
  %s7 = inlined_call_operand.vmem [shape: f32[8,1], index: 7, kind: output, shape index: {}]
  %s8 = sld [smem:[#allocation0]]
  $region50: #{tpu_custom_call.1} parent=0
    _
  %s10 = ssub.s32 1, %s8
  %s11 = scalar_select 0, %s10, %s8
  %v12 = vstv %s6
  %13 = vst [vmem:[#allocation2] sm:$0x1] %v12
  $region1: #{tpu_custom_call.1} parent=0
    #allocation3 [shape = 'u8[4096]{0}', space=vmem, size = 0x1000, scoped, tag = 'input window, operand 0, single buffered']
    #allocation4 [shape = 's32[1]{0}', space=sflag, size = 0x4, scoped, tag = 'scoped memory for tpu_custom_call.1']
    #allocation5 [shape = 'u8[16384]{0}', space=vmem, size = 0x4000, scoped, tag = 'input window, operand 1, single buffered']
    #allocation6 [shape = 's32[1]{0}', space=sflag, size = 0x4, scoped, tag = 'scoped memory for tpu_custom_call.1']
    #allocation7 [shape = 'u8[16384]{0}', space=vmem, size = 0x4000, scoped, tag = 'input window, operand 3, single buffered']
    %14 = vsyncpa [#allocation4], 0
    %15 = vsyncpa [#allocation6], 0
    // Predicated region
    $region2: #{tpu_custom_call.1} parent=1 // pred_check
      _
    $region3: #{tpu_custom_call.1} parent=1 // pred_check_branch
      %17 = sbr.rel (0) target = $region5
    $region4: #{tpu_custom_call.1} parent=1 // pred_region
      %s19 = ssub.s32 128, 128
      %20 = vsyncadd [#allocation4], %s19
      %s22 = sshll.u32 [#allocation3], 4
      %s23 = int_to_ptr.vmem [resolvable:$true] %s22
      %25 = dma.hbm_to_vmem [thread:$0]  %s0, 128, %s23, [#allocation4]
    $region5: #{tpu_custom_call.1} parent=1 // pred_fallthru
      _
    // Predicated region
    $region6: #{tpu_custom_call.1} parent=1 // pred_check
      _
    $region7: #{tpu_custom_call.1} parent=1 // pred_check_branch
      %27 = sbr.rel (0) target = $region9
    $region8: #{tpu_custom_call.1} parent=1 // pred_region
      %s29 = ssub.s32 512, 512
      %30 = vsyncadd [#allocation6], %s29
      %s31 = sshll.u32 [#allocation5], 4
      %s32 = int_to_ptr.vmem [resolvable:$true] %s31
      %37 = dma.hbm_to_vmem [thread:$0]  %s1, 512, %s32, [#allocation6], 128, 128, 8
    $region9: #{tpu_custom_call.1} parent=1 // pred_fallthru
      _
    // Predicated region
    $region10: #{tpu_custom_call.1} parent=1 // pred_check
      _
    $region11: #{tpu_custom_call.1} parent=1 // pred_check_branch
      %39 = sbr.rel (0) target = $region13
    $region12: #{tpu_custom_call.1} parent=1 // pred_region
      _
    $region13: #{tpu_custom_call.1} parent=1 // pred_fallthru
      _
    // Predicated region
    $region14: #{tpu_custom_call.1} parent=1 // pred_check
      _
    $region15: #{tpu_custom_call.1} parent=1 // pred_check_branch
      %41 = sbr.rel (0) target = $region17
    $region16: #{tpu_custom_call.1} parent=1 // pred_region
      %s43 = ssub.s32 512, 512
      %44 = vsyncadd [#allocation6], %s43
      %s45 = sshll.u32 [#allocation7], 4
      %s46 = int_to_ptr.vmem [resolvable:$true] %s45
      %51 = dma.hbm_to_vmem [thread:$0]  %s3, 512, %s46, [#allocation6], 128, 128, 8
    $region17: #{tpu_custom_call.1} parent=1 // pred_fallthru
      _
    // Predicated region
    $region18: #{tpu_custom_call.1} parent=1 // pred_check
      _
    $region19: #{tpu_custom_call.1} parent=1 // pred_check_branch
      %53 = sbr.rel (0) target = $region21
    $region20: #{tpu_custom_call.1} parent=1 // pred_region
      _
    $region21: #{tpu_custom_call.1} parent=1 // pred_fallthru
      _
    // Predicated region
    $region22: #{tpu_custom_call.1} parent=1 // pred_check
      _
    $region23: #{tpu_custom_call.1} parent=1 // pred_check_branch
      %55 = sbr.rel (0) target = $region25
    $region24: #{tpu_custom_call.1} parent=1 // pred_region
      _
    $region25: #{tpu_custom_call.1} parent=1 // pred_fallthru
      _
    // Predicated region
    $region26: #{tpu_custom_call.1} parent=1 // pred_check
      _
    $region27: #{tpu_custom_call.1} parent=1 // pred_check_branch
      %57 = sbr.rel (0) target = $region29
    $region28: #{tpu_custom_call.1} parent=1 // pred_region
      _
    $region29: #{tpu_custom_call.1} parent=1 // pred_fallthru
      _
    // Predicated region
    $region30: #{tpu_custom_call.1} parent=1 // pred_check
      _
    $region31: #{tpu_custom_call.1} parent=1 // pred_check_branch
      %59 = sbr.rel (0) target = $region33
    $region32: #{tpu_custom_call.1} parent=1 // pred_region
      %60 = dma.done [#allocation4], 128
    $region33: #{tpu_custom_call.1} parent=1 // pred_fallthru
      _
    // Predicated region
    $region34: #{tpu_custom_call.1} parent=1 // pred_check
      _
    $region35: #{tpu_custom_call.1} parent=1 // pred_check_branch
      %62 = sbr.rel (0) target = $region37
    $region36: #{tpu_custom_call.1} parent=1 // pred_region
      %63 = dma.done [#allocation6], 512
    $region37: #{tpu_custom_call.1} parent=1 // pred_fallthru
      _
    // Predicated region
    $region38: #{tpu_custom_call.1} parent=1 // pred_check
      _
    $region39: #{tpu_custom_call.1} parent=1 // pred_check_branch
      %65 = sbr.rel (0) target = $region41
    $region40: #{tpu_custom_call.1} parent=1 // pred_region
      %66 = dma.done [#allocation6], 512
    $region41: #{tpu_custom_call.1} parent=1 // pred_fallthru
      _
    %v67 = vld [vmem:[#allocation3] sm:$0xff]
    %v68 = vld [vmem:[#allocation5] sm:$0xff]
    %v69 = vld [vmem:[#allocation5 + $0x8] sm:$0xff]
    %v70 = vld [vmem:[#allocation5 + $0x10] sm:$0xff]
    %v71 = vld [vmem:[#allocation5 + $0x18] sm:$0xff]
    %v72 = vld [vmem:[%s2] sm:$0x1]
    %v74 = vlaneseq
    %v75 = vshrl.u32 %v74, 7
    %v76 = vsub.s32 0, %v75
    %v77 = vrot.slane %v72, %v76
    %vm79 = vcmask 261120
    %v81 = vsel %vm79, %v67, 0
    %83 = vmatprep.subr.mxu0 0.0
    %84 = vmatpush1.msra.mxu0 %v68
    %85 = vmatprep.subr.mxu0 0.0
    %86 = vmatpush1.msra.mxu0 %v69
    %87 = vmatprep.subr.mxu0 0.0
    %88 = vmatpush1.msra.mxu0 %v70
    %89 = vmatprep.subr.mxu0 0.0
    %90 = vmatpush1.msra.mxu0 %v71
    %91 = vmatprep.subr.mxu0 0.0
    %92 = vmatpush1.msra.mxu0 0.0
    %93 = vmatprep.subr.mxu0 0.0
    %94 = vmatpush1.msra.mxu0 0.0
    %95 = vmatprep.subr.mxu0 0.0
    %96 = vmatpush1.msra.mxu0 0.0
    %97 = vmatprep.subr.mxu0 0.0
    %98 = vmatpush1.msra.mxu0 0.0
    %99 = vmatprep.subr.mxu0 0.0
    %100 = vmatpush1.msra.mxu0 0.0
    %101 = vmatprep.subr.mxu0 0.0
    %102 = vmatpush1.msra.mxu0 0.0
    %103 = vmatprep.subr.mxu0 0.0
    %104 = vmatpush1.msra.mxu0 0.0
    %105 = vmatprep.subr.mxu0 0.0
    %106 = vmatpush1.msra.mxu0 0.0
    %107 = vmatprep.subr.mxu0 0.0
    %108 = vmatpush1.msra.mxu0 0.0
    %109 = vmatprep.subr.mxu0 0.0
    %110 = vmatpush1.msra.mxu0 0.0
    %111 = vmatprep.subr.mxu0 0.0
    %112 = vmatpush1.msra.mxu0 0.0
    %113 = vmatprep.subr.mxu0 0.0
    %114 = vmatpush1.msra.mxu0 0.0
    %115 = vmatprep.subr.mxu0 0.0
    %116 = vmatpush1.msra.mxu0 0.0
    %117 = vmatprep.subr.mxu0 0.0
    %118 = vmatpush1.msra.mxu0 0.0
    %119 = vmatprep.subr.mxu0 0.0
    %120 = vmatpush1.msra.mxu0 0.0
    %121 = vmatprep.subr.mxu0 0.0
    %122 = vmatpush1.msra.mxu0 0.0
    %123 = vmatprep.subr.mxu0 0.0
    %124 = vmatpush1.msra.mxu0 0.0
    %125 = vmatprep.subr.mxu0 0.0
    %126 = vmatpush1.msra.mxu0 0.0
    %127 = vmatprep.subr.mxu0 0.0
    %128 = vmatpush1.msra.mxu0 0.0
    %129 = vmatprep.subr.mxu0 0.0
    %130 = vmatpush1.msra.mxu0 0.0
    %131 = vmatprep.subr.mxu0 0.0
    %132 = vmatpush1.msra.mxu0 0.0
    %133 = vmatprep.subr.mxu0 0.0
    %134 = vmatpush1.msra.mxu0 0.0
    %135 = vmatprep.subr.mxu0 0.0
    %136 = vmatpush1.msra.mxu0 0.0
    %137 = vmatprep.subr.mxu0 0.0
    %138 = vmatpush1.msra.mxu0 0.0
    %139 = vmatprep.subr.mxu0 0.0
    %140 = vmatpush1.msra.mxu0 0.0
    %141 = vmatprep.subr.mxu0 0.0
    %142 = vmatpush1.msra.mxu0 0.0
    %143 = vmatprep.subr.mxu0 0.0
    %144 = vmatpush1.msra.mxu0 0.0
    %145 = vmatprep.subr.mxu0 0.0
    %146 = vmatpush1.msra.mxu0 0.0
    %147 = vmatprep.mubr.f32.mxu0 0.0
    %148 = vmatmul.mubr.f32.gmra.mrb[0].mxu0 %v81
    %v149 = vpop.f32.mrb[0].mxu0
    %v150 = vadd.f32 %v77, %v149
    %v151 = vpop.f32.mrb[0].mxu0
    %152 = vdwg.mxu0
    %v153 = vmax.f32 %v150, 0.0
    %v154 = vld [vmem:[#allocation7] sm:$0xff]
    %v155 = vld [vmem:[#allocation7 + $0x8] sm:$0xff]
    %v156 = vld [vmem:[#allocation7 + $0x10] sm:$0xff]
    %v157 = vld [vmem:[#allocation7 + $0x18] sm:$0xff]
    %v158 = vld [vmem:[%s4] sm:$0x1]
    %v160 = vlaneseq
    %v161 = vshrl.u32 %v160, 7
    %v162 = vsub.s32 0, %v161
    %v163 = vrot.slane %v158, %v162
    %v166 = vsel %vm79, %v153, 0
    %168 = vmatprep.subr.mxu0 0.0
    %169 = vmatpush1.msra.mxu0 %v154
    %170 = vmatprep.subr.mxu0 0.0
    %171 = vmatpush1.msra.mxu0 %v155
    %172 = vmatprep.subr.mxu0 0.0
    %173 = vmatpush1.msra.mxu0 %v156
    %174 = vmatprep.subr.mxu0 0.0
    %175 = vmatpush1.msra.mxu0 %v157
    %176 = vmatprep.subr.mxu0 0.0
    %177 = vmatpush1.msra.mxu0 0.0
    %178 = vmatprep.subr.mxu0 0.0
    %179 = vmatpush1.msra.mxu0 0.0
    %180 = vmatprep.subr.mxu0 0.0
    %181 = vmatpush1.msra.mxu0 0.0
    %182 = vmatprep.subr.mxu0 0.0
    %183 = vmatpush1.msra.mxu0 0.0
    %184 = vmatprep.subr.mxu0 0.0
    %185 = vmatpush1.msra.mxu0 0.0
    %186 = vmatprep.subr.mxu0 0.0
    %187 = vmatpush1.msra.mxu0 0.0
    %188 = vmatprep.subr.mxu0 0.0
    %189 = vmatpush1.msra.mxu0 0.0
    %190 = vmatprep.subr.mxu0 0.0
    %191 = vmatpush1.msra.mxu0 0.0
    %192 = vmatprep.subr.mxu0 0.0
    %193 = vmatpush1.msra.mxu0 0.0
    %194 = vmatprep.subr.mxu0 0.0
    %195 = vmatpush1.msra.mxu0 0.0
    %196 = vmatprep.subr.mxu0 0.0
    %197 = vmatpush1.msra.mxu0 0.0
    %198 = vmatprep.subr.mxu0 0.0
    %199 = vmatpush1.msra.mxu0 0.0
    %200 = vmatprep.subr.mxu0 0.0
    %201 = vmatpush1.msra.mxu0 0.0
    %202 = vmatprep.subr.mxu0 0.0
    %203 = vmatpush1.msra.mxu0 0.0
    %204 = vmatprep.subr.mxu0 0.0
    %205 = vmatpush1.msra.mxu0 0.0
    %206 = vmatprep.subr.mxu0 0.0
    %207 = vmatpush1.msra.mxu0 0.0
    %208 = vmatprep.subr.mxu0 0.0
    %209 = vmatpush1.msra.mxu0 0.0
    %210 = vmatprep.subr.mxu0 0.0
    %211 = vmatpush1.msra.mxu0 0.0
    %212 = vmatprep.subr.mxu0 0.0
    %213 = vmatpush1.msra.mxu0 0.0
    %214 = vmatprep.subr.mxu0 0.0
    %215 = vmatpush1.msra.mxu0 0.0
    %216 = vmatprep.subr.mxu0 0.0
    %217 = vmatpush1.msra.mxu0 0.0
    %218 = vmatprep.subr.mxu0 0.0
    %219 = vmatpush1.msra.mxu0 0.0
    %220 = vmatprep.subr.mxu0 0.0
    %221 = vmatpush1.msra.mxu0 0.0
    %222 = vmatprep.subr.mxu0 0.0
    %223 = vmatpush1.msra.mxu0 0.0
    %224 = vmatprep.subr.mxu0 0.0
    %225 = vmatpush1.msra.mxu0 0.0
    %226 = vmatprep.subr.mxu0 0.0
    %227 = vmatpush1.msra.mxu0 0.0
    %228 = vmatprep.subr.mxu0 0.0
    %229 = vmatpush1.msra.mxu0 0.0
    %230 = vmatprep.subr.mxu0 0.0
    %231 = vmatpush1.msra.mxu0 0.0
    %232 = vmatprep.mubr.f32.mxu0 0.0
    %233 = vmatmul.mubr.f32.gmra.mrb[0].mxu0 %v166
    %v234 = vpop.f32.mrb[0].mxu0
    %v235 = vadd.f32 %v163, %v234
    %v236 = vpop.f32.mrb[0].mxu0
    %237 = vdwg.mxu0
    %v238 = vmax.f32 %v235, 0.0
    %v239 = vld [vmem:[%s5] sm:$0x1]
    %v241 = vlaneseq
    %v242 = vshrl.u32 %v241, 7
    %v243 = vsub.s32 0, %v242
    %v244 = vrot.slane %v239, %v243
    %v246 = vmul.f32 %v238, %v244
    %v247 = vsel %vm79, %v246, 0.0
    %248 = vadd.xlane.f32.xlu0 %v247
    %v249 = vpop.xlane.xlu0 %248
    %v250 = vld [vmem:[#allocation2] sm:$0x1]
    %v252 = vlaneseq
    %v253 = vshrl.u32 %v252, 7
    %v254 = vsub.s32 0, %v253
    %v255 = vrot.slane %v250, %v254
    %v257 = vadd.f32 %v249, %v255
    %v258 = vxor.u32 %v257, 2147483648
    %v259 = vmul.f32 %v258, 1.442695
    %v260 = vpow.pop %v259
    %v261 = vadd.f32 %v260, 1.0
    %v262 = vrcp.pop %v261
    %v263 = vmul.f32 1.0, %v262
    %vm264 = vcmask 7168
    %265 = vst.msk [vmem:[%s7] sm:$0xff] %vm264, %v263
    // Predicated region
    $region42: #{tpu_custom_call.1} parent=1 // pred_check
      _
    $region43: #{tpu_custom_call.1} parent=1 // pred_check_branch
      %267 = sbr.rel (0) target = $region45
    $region44: #{tpu_custom_call.1} parent=1 // pred_region
      _
    $region45: #{tpu_custom_call.1} parent=1 // pred_fallthru
      _
    // Predicated region
    $region46: #{tpu_custom_call.1} parent=1 // pred_check
      _
    $region47: #{tpu_custom_call.1} parent=1 // pred_check_branch
      %269 = sbr.rel (0) target = $region49
    $region48: #{tpu_custom_call.1} parent=1 // pred_region
      _
    $region49: #{tpu_custom_call.1} parent=1 // pred_fallthru
      _
    %270 = vsyncpa [#allocation4], 1
    %271 = vsyncpa [#allocation6], 1

</llo_original>
